<compile_context>
chip_gen: v5e
topology: v5e:2x2
jax: 0.10.0
libtpu: 0.0.40
codegen_flags: <defaults>
</compile_context>

<pallas_src>
import functools

import jax
import jax.numpy as jnp
from jax.experimental import pallas as pl
from jax.experimental.pallas import tpu as pltpu

_NEG_BIG = -1e30  # mask value for padded logits (exp(_NEG_BIG - m) == 0)


def _round_up(x, m):
    return ((x + m - 1) // m) * m


def mlp_kernel(x_ref, w1_ref, b1_ref, w2_ref, b2_ref, o_ref):
    # Layer 1: Linear (bf16 inputs, f32 accumulate) + bias + ReLU
    x = x_ref[...]                                           # (TB, IN) bf16
    h = jnp.dot(x, w1_ref[...], preferred_element_type=jnp.float32)
    h = jnp.maximum(h + b1_ref[...], 0.0)                    # (TB, H_PAD) f32

    # Layer 5: Linear (bf16 LHS/RHS on the MXU, f32 accumulate) + bias.
    logits = jnp.dot(h.astype(jnp.bfloat16), w2_ref[...],
                     preferred_element_type=jnp.float32)
    logits = logits + b2_ref[...]                            # padded cols ~ -1e30

    # Stable softmax over the last dim; padded lanes contribute exp(...) == 0.
    m = jnp.max(logits, axis=-1, keepdims=True)
    e = jnp.exp(logits - m)
    denom = jnp.sum(e, axis=-1, keepdims=True)
    o_ref[...] = e * pl.reciprocal(denom, approx=True)


@functools.partial(jax.jit, static_argnames=("block_b",))
def neural_network_forward(x_nchw, w1, b1, w2, b2, *, block_b=256):
    """Forward pass matching the PyTorch NeuralNetwork module.

    x_nchw: (B, C, H, W)
    w1:     (input_size, hidden_size1)   (transposed vs torch's weight layout)
    b1:     (hidden_size1,)
    w2:     (hidden_size1, output_size)
    b2:     (output_size,)
    returns: (B, output_size) float32 softmax probabilities
    """
    B = x_nchw.shape[0]
    x_flat = x_nchw.reshape(B, -1)                      # torch: x.view(B, -1)
    in_dim = x_flat.shape[1]
    h1 = w1.shape[1]
    out_dim = w2.shape[1]

    # Lane-dense padded sizes.
    h_pad = _round_up(max(h1, 128), 128)
    o_pad = _round_up(max(out_dim, 128), 128)

    # Batch tile: multiple of 8 (sublane), capped at block_b.
    tb = min(block_b, _round_up(B, 8))
    b_pad = _round_up(B, tb)

    if b_pad != B:
        x_flat = jnp.pad(x_flat, ((0, b_pad - B), (0, 0)))
    x_bf16 = x_flat.astype(jnp.bfloat16)

    # Padded bf16 weights; padded hidden columns are zero so ReLU output there
    # is 0 and contributes nothing to layer 2.  Padded output columns get a
    # huge negative bias so they vanish under softmax.
    w1_p = jnp.zeros((in_dim, h_pad), jnp.bfloat16).at[:, :h1].set(
        w1.astype(jnp.bfloat16))
    b1_p = jnp.zeros((1, h_pad), jnp.float32).at[:, :h1].set(
        b1.astype(jnp.float32))
    w2_p = jnp.zeros((h_pad, o_pad), jnp.bfloat16).at[:h1, :out_dim].set(
        w2.astype(jnp.bfloat16))
    b2_p = jnp.full((1, o_pad), _NEG_BIG, jnp.float32).at[:, :out_dim].set(
        b2.astype(jnp.float32))

    grid = (b_pad // tb,)

    bytes_accessed = (
        x_bf16.size * 2 + w1_p.size * 2 + w2_p.size * 2
        + b1_p.size * 4 + b2_p.size * 4 + b_pad * o_pad * 4)
    cost = pl.CostEstimate(
        flops=2 * b_pad * (in_dim * h_pad + h_pad * o_pad),
        transcendentals=b_pad * o_pad,
        bytes_accessed=bytes_accessed)

    out_padded = pl.pallas_call(
        mlp_kernel,
        out_shape=jax.ShapeDtypeStruct((b_pad, o_pad), jnp.float32),
        grid_spec=pltpu.PrefetchScalarGridSpec(
            num_scalar_prefetch=0,
            grid=grid,
            in_specs=[
                pl.BlockSpec((tb, in_dim), lambda i: (i, 0)),    # x tile
                pl.BlockSpec((in_dim, h_pad), lambda i: (0, 0)),  # w1 resident
                pl.BlockSpec((1, h_pad), lambda i: (0, 0)),       # b1 resident
                pl.BlockSpec((h_pad, o_pad), lambda i: (0, 0)),   # w2 resident
                pl.BlockSpec((1, o_pad), lambda i: (0, 0)),       # b2 resident
            ],
            out_specs=pl.BlockSpec((tb, o_pad), lambda i: (i, 0)),
        ),
        compiler_params=pltpu.CompilerParams(
            dimension_semantics=("parallel",)),
        cost_estimate=cost,
    )(x_bf16, w1_p, b1_p, w2_p, b2_p)

    # Strip batch / output padding.
    return out_padded[:B, :out_dim]


if __name__ == "__main__":
    # Small shapes consistent with the module: flattenable input -> MLP.
    B, C, H, W = 2, 4, 16, 16
    input_size = C * H * W          # 1024
    hidden_size1 = 32
    output_size = 10

    key = jax.random.PRNGKey(0)
    kx, k1, k2, k3, k4 = jax.random.split(key, 5)

    x = jax.random.normal(kx, (B, C, H, W), dtype=jnp.float32)

    # Deterministic init mimicking nn.Linear's U(-1/sqrt(fan_in), 1/sqrt(fan_in)).
    lim1 = 1.0 / jnp.sqrt(jnp.float32(input_size))
    w1 = jax.random.uniform(k1, (input_size, hidden_size1),
                            minval=-lim1, maxval=lim1, dtype=jnp.float32)
    b1 = jax.random.uniform(k2, (hidden_size1,),
                            minval=-lim1, maxval=lim1, dtype=jnp.float32)

    lim2 = 1.0 / jnp.sqrt(jnp.float32(hidden_size1))
    w2 = jax.random.uniform(k3, (hidden_size1, output_size),
                            minval=-lim2, maxval=lim2, dtype=jnp.float32)
    b2 = jax.random.uniform(k4, (output_size,),
                            minval=-lim2, maxval=lim2, dtype=jnp.float32)

    out = neural_network_forward(x, w1, b1, w2, b2)
    out = jax.block_until_ready(out)

    # Pure-JAX f32 reference (same math as the PyTorch module).
    x_flat = x.reshape(B, -1)
    h_ref = jnp.maximum(x_flat @ w1 + b1, 0.0)
    ref = jax.nn.softmax(h_ref @ w2 + b2, axis=-1)

    assert out.shape == (B, output_size)
    # Softmax rows sum to ~1 (approx reciprocal + bf16 matmuls => loose tol).
    row_sums = jnp.sum(out, axis=1)
    assert bool(jnp.all(jnp.abs(row_sums - 1.0) < 5e-3)), row_sums
    # Matches the f32 reference within mixed-precision tolerance.
    assert bool(jnp.max(jnp.abs(out - ref)) < 2e-2), jnp.max(jnp.abs(out - ref))

    print("KERNEL_OK")
</pallas_src>

<mosaic_0001>
module attributes {stable_mosaic.version = 11 : i64} {
  func.func @mlp_kernel(%arg0: i32, %arg1: memref<8x1024xbf16, #tpu.memory_space<vmem>>, %arg2: memref<1024x128xbf16, #tpu.memory_space<vmem>>, %arg3: memref<1x128xf32, #tpu.memory_space<vmem>>, %arg4: memref<128x128xbf16, #tpu.memory_space<vmem>>, %arg5: memref<1x128xf32, #tpu.memory_space<vmem>>, %arg6: memref<8x128xf32, #tpu.memory_space<vmem>>) attributes {dimension_semantics = [#tpu.dimension_semantics<parallel>], iteration_bounds = array<i64: 1>, scalar_prefetch = 0 : i64, scratch_operands = 0 : i64, tpu.core_type = #tpu.core_type<tc>, window_params = [{transform_indices = @transform_0, window_bounds = array<i64: 8, 1024>}, {pipeline_mode = #tpu.pipeline_mode<synchronous>, transform_indices = @transform_1, window_bounds = array<i64: 1024, 128>}, {pipeline_mode = #tpu.pipeline_mode<synchronous>, transform_indices = @transform_2, window_bounds = array<i64: 1, 128>}, {pipeline_mode = #tpu.pipeline_mode<synchronous>, transform_indices = @transform_3, window_bounds = array<i64: 128, 128>}, {pipeline_mode = #tpu.pipeline_mode<synchronous>, transform_indices = @transform_4, window_bounds = array<i64: 1, 128>}, {transform_indices = @transform_5, window_bounds = array<i64: 8, 128>}]} {
    %c0 = arith.constant 0 : index
    %c0_0 = arith.constant 0 : index
    %0 = vector.load %arg1[%c0, %c0_0] : memref<8x1024xbf16, #tpu.memory_space<vmem>>, vector<8x1024xbf16>
    %c0_1 = arith.constant 0 : index
    %c0_2 = arith.constant 0 : index
    %1 = vector.load %arg2[%c0_1, %c0_2] : memref<1024x128xbf16, #tpu.memory_space<vmem>>, vector<1024x128xbf16>
    %cst = arith.constant dense<0.000000e+00> : vector<8x128xf32>
    %2 = tpu.matmul %0, %1, %cst {dimension_numbers = #tpu.dot_dimension_numbers<[1], [0], [0], [1], [0, 0, 1, 1], [], []>} : vector<8x1024xbf16>, vector<1024x128xbf16>, vector<8x128xf32> -> vector<8x128xf32>
    %c0_3 = arith.constant 0 : index
    %c0_4 = arith.constant 0 : index
    %3 = vector.load %arg3[%c0_3, %c0_4] : memref<1x128xf32, #tpu.memory_space<vmem>>, vector<1x128xf32>
    %4 = vector.broadcast %3 : vector<1x128xf32> to vector<8x128xf32>
    %5 = arith.addf %2, %4 : vector<8x128xf32>
    %cst_5 = arith.constant 0.000000e+00 : f32
    %6 = vector.broadcast %cst_5 : f32 to vector<8x128xf32>
    %7 = arith.maximumf %5, %6 : vector<8x128xf32>
    %8 = arith.truncf %7 : vector<8x128xf32> to vector<8x128xbf16>
    %c0_6 = arith.constant 0 : index
    %c0_7 = arith.constant 0 : index
    %9 = vector.load %arg4[%c0_6, %c0_7] : memref<128x128xbf16, #tpu.memory_space<vmem>>, vector<128x128xbf16>
    %cst_8 = arith.constant dense<0.000000e+00> : vector<8x128xf32>
    %10 = tpu.matmul %8, %9, %cst_8 {dimension_numbers = #tpu.dot_dimension_numbers<[1], [0], [0], [1], [0, 0, 1, 1], [], []>} : vector<8x128xbf16>, vector<128x128xbf16>, vector<8x128xf32> -> vector<8x128xf32>
    %c0_9 = arith.constant 0 : index
    %c0_10 = arith.constant 0 : index
    %11 = vector.load %arg5[%c0_9, %c0_10] : memref<1x128xf32, #tpu.memory_space<vmem>>, vector<1x128xf32>
    %12 = vector.broadcast %11 : vector<1x128xf32> to vector<8x128xf32>
    %13 = arith.addf %10, %12 : vector<8x128xf32>
    %cst_11 = arith.constant dense<0xFF800000> : vector<8xf32>
    %14 = vector.multi_reduction <maximumf>, %13, %cst_11 [1] : vector<8x128xf32> to vector<8xf32>
    %15 = vector.shape_cast %14 : vector<8xf32> to vector<8x1xf32>
    %16 = vector.broadcast %15 : vector<8x1xf32> to vector<8x128xf32>
    %17 = arith.subf %13, %16 : vector<8x128xf32>
    %18 = math.exp %17 : vector<8x128xf32>
    %cst_12 = arith.constant dense<0.000000e+00> : vector<8xf32>
    %19 = vector.multi_reduction <add>, %18, %cst_12 [1] : vector<8x128xf32> to vector<8xf32>
    %20 = vector.shape_cast %19 : vector<8xf32> to vector<8x1xf32>
    %21 = tpu.reciprocal %20 {approx = true} : vector<8x1xf32> -> vector<8x1xf32>
    %22 = vector.broadcast %21 : vector<8x1xf32> to vector<8x128xf32>
    %23 = arith.mulf %18, %22 : vector<8x128xf32>
    %c0_13 = arith.constant 0 : index
    %c0_14 = arith.constant 0 : index
    %24 = vector.load %arg6[%c0_13, %c0_14] : memref<8x128xf32, #tpu.memory_space<vmem>>, vector<8x128xf32>
    tpu.vector_store %arg6[%c0_13, %c0_14], %23 {strides = array<i32>} : memref<8x128xf32, #tpu.memory_space<vmem>>, vector<8x128xf32>,
    return
  }
  func.func @transform_0(%arg0: i32) -> (i32, i32) {
    %c0_i32 = arith.constant 0 : i32
    %c0_i32_0 = arith.constant 0 : i32
    return %arg0, %c0_i32 : i32, i32
  }
  func.func @transform_1(%arg0: i32) -> (i32, i32) {
    %c0_i32 = arith.constant 0 : i32
    %c0_i32_0 = arith.constant 0 : i32
    %c0_i32_1 = arith.constant 0 : i32
    return %c0_i32, %c0_i32_0 : i32, i32
  }
  func.func @transform_2(%arg0: i32) -> (i32, i32) {
    %c0_i32 = arith.constant 0 : i32
    %c0_i32_0 = arith.constant 0 : i32
    %c0_i32_1 = arith.constant 0 : i32
    return %c0_i32, %c0_i32_0 : i32, i32
  }
  func.func @transform_3(%arg0: i32) -> (i32, i32) {
    %c0_i32 = arith.constant 0 : i32
    %c0_i32_0 = arith.constant 0 : i32
    %c0_i32_1 = arith.constant 0 : i32
    return %c0_i32, %c0_i32_0 : i32, i32
  }
  func.func @transform_4(%arg0: i32) -> (i32, i32) {
    %c0_i32 = arith.constant 0 : i32
    %c0_i32_0 = arith.constant 0 : i32
    %c0_i32_1 = arith.constant 0 : i32
    return %c0_i32, %c0_i32_0 : i32, i32
  }
  func.func @transform_5(%arg0: i32) -> (i32, i32) {
    %c0_i32 = arith.constant 0 : i32
    %c0_i32_0 = arith.constant 0 : i32
    return %arg0, %c0_i32 : i32, i32
  }
}

</mosaic_0001>

<llo_original>
// kernel: neural_network_forward.1
$region0: #{neural_network_forward.1}
  #allocation0 [shape = 'u32[]', space=smem, size = 0x4, offset = 0x4, fixed_abs, tag = 'smem constant byte address 0x4 - core index']
  #allocation1 [shape = 'u32[72,128]{1,0:T(1,128)}', space=vmem, size = 0x9000, scoped, tag = 'internal scratch']
  %s0 = inlined_call_operand.vmem [shape: bf16[8,1024], index: 0, kind: input, shape index: {}]
  %s1 = inlined_call_operand.vmem [shape: bf16[1024,128], index: 1, kind: input, shape index: {}]
  %s2 = inlined_call_operand.vmem [shape: f32[1,128], index: 2, kind: input, shape index: {}]
  %s3 = inlined_call_operand.vmem [shape: bf16[128,128], index: 3, kind: input, shape index: {}]
  %s4 = inlined_call_operand.vmem [shape: f32[1,128], index: 4, kind: input, shape index: {}]
  %s5 = inlined_call_operand.vmem [shape: f32[8,128], index: 5, kind: output, shape index: {}]
  %s6 = sld [smem:[#allocation0]]
  $region30: #{neural_network_forward.1} parent=0
    _
  %s8 = ssub.s32 1, %s6
  %s9 = scalar_select 0, %s8, %s6
  // Predicated region
  $region2: #{neural_network_forward.1} parent=0 // pred_check
    _
  $region3: #{neural_network_forward.1} parent=0 // pred_check_branch
    %11 = sbr.rel (0) target = $region5
  $region4: #{neural_network_forward.1} parent=0 // pred_region
    _
  $region5: #{neural_network_forward.1} parent=0 // pred_fallthru
    _
  // Predicated region
  $region6: #{neural_network_forward.1} parent=0 // pred_check
    _
  $region7: #{neural_network_forward.1} parent=0 // pred_check_branch
    %13 = sbr.rel (0) target = $region9
  $region8: #{neural_network_forward.1} parent=0 // pred_region
    _
  $region9: #{neural_network_forward.1} parent=0 // pred_fallthru
    _
  // Predicated region
  $region10: #{neural_network_forward.1} parent=0 // pred_check
    _
  $region11: #{neural_network_forward.1} parent=0 // pred_check_branch
    %15 = sbr.rel (0) target = $region13
  $region12: #{neural_network_forward.1} parent=0 // pred_region
    _
  $region13: #{neural_network_forward.1} parent=0 // pred_fallthru
    _
  // Predicated region
  $region14: #{neural_network_forward.1} parent=0 // pred_check
    _
  $region15: #{neural_network_forward.1} parent=0 // pred_check_branch
    %17 = sbr.rel (0) target = $region17
  $region16: #{neural_network_forward.1} parent=0 // pred_region
    _
  $region17: #{neural_network_forward.1} parent=0 // pred_fallthru
    _
  // Predicated region
  $region18: #{neural_network_forward.1} parent=0 // pred_check
    _
  $region19: #{neural_network_forward.1} parent=0 // pred_check_branch
    %19 = sbr.rel (0) target = $region21
  $region20: #{neural_network_forward.1} parent=0 // pred_region
    _
  $region21: #{neural_network_forward.1} parent=0 // pred_fallthru
    _
  %v20 = vld [vmem:[%s0] sm:$0xff]
  %v21 = vld [vmem:[%s0 + $0x8] sm:$0xff]
  %v22 = vld [vmem:[%s0 + $0x10] sm:$0xff]
  %v23 = vld [vmem:[%s0 + $0x18] sm:$0xff]
  %v24 = vld [vmem:[%s1] sm:$0xf]
  %v25 = vld [vmem:[%s1 + $0x4] sm:$0xf]
  %v26 = vld [vmem:[%s1 + $0x8] sm:$0xf]
  %v27 = vld [vmem:[%s1 + $0xc] sm:$0xf]
  %v28 = vld [vmem:[%s1 + $0x10] sm:$0xf]
  %v29 = vld [vmem:[%s1 + $0x14] sm:$0xf]
  %v30 = vld [vmem:[%s1 + $0x18] sm:$0xf]
  %v31 = vld [vmem:[%s1 + $0x1c] sm:$0xf]
  %v32 = vld [vmem:[%s1 + $0x20] sm:$0xf]
  %v33 = vld [vmem:[%s1 + $0x24] sm:$0xf]
  %v34 = vld [vmem:[%s1 + $0x28] sm:$0xf]
  %v35 = vld [vmem:[%s1 + $0x2c] sm:$0xf]
  %v36 = vld [vmem:[%s1 + $0x30] sm:$0xf]
  %v37 = vld [vmem:[%s1 + $0x34] sm:$0xf]
  %v38 = vld [vmem:[%s1 + $0x38] sm:$0xf]
  %v39 = vld [vmem:[%s1 + $0x3c] sm:$0xf]
  %v40 = vld [vmem:[%s1 + $0x40] sm:$0xf]
  %v41 = vld [vmem:[%s1 + $0x44] sm:$0xf]
  %v42 = vld [vmem:[%s1 + $0x48] sm:$0xf]
  %v43 = vld [vmem:[%s1 + $0x4c] sm:$0xf]
  %v44 = vld [vmem:[%s1 + $0x50] sm:$0xf]
  %v45 = vld [vmem:[%s1 + $0x54] sm:$0xf]
  %v46 = vld [vmem:[%s1 + $0x58] sm:$0xf]
  %v47 = vld [vmem:[%s1 + $0x5c] sm:$0xf]
  %v48 = vld [vmem:[%s1 + $0x60] sm:$0xf]
  %v49 = vld [vmem:[%s1 + $0x64] sm:$0xf]
  %v50 = vld [vmem:[%s1 + $0x68] sm:$0xf]
  %v51 = vld [vmem:[%s1 + $0x6c] sm:$0xf]
  %v52 = vld [vmem:[%s1 + $0x70] sm:$0xf]
  %v53 = vld [vmem:[%s1 + $0x74] sm:$0xf]
  %v54 = vld [vmem:[%s1 + $0x78] sm:$0xf]
  %v55 = vld [vmem:[%s1 + $0x7c] sm:$0xf]
  %v56 = vld [vmem:[%s1 + $0x80] sm:$0xf]
  %v57 = vld [vmem:[%s1 + $0x84] sm:$0xf]
  %v58 = vld [vmem:[%s1 + $0x88] sm:$0xf]
  %v59 = vld [vmem:[%s1 + $0x8c] sm:$0xf]
  %v60 = vld [vmem:[%s1 + $0x90] sm:$0xf]
  %v61 = vld [vmem:[%s1 + $0x94] sm:$0xf]
  %v62 = vld [vmem:[%s1 + $0x98] sm:$0xf]
  %v63 = vld [vmem:[%s1 + $0x9c] sm:$0xf]
  %v64 = vld [vmem:[%s1 + $0xa0] sm:$0xf]
  %v65 = vld [vmem:[%s1 + $0xa4] sm:$0xf]
  %v66 = vld [vmem:[%s1 + $0xa8] sm:$0xf]
  %v67 = vld [vmem:[%s1 + $0xac] sm:$0xf]
  %v68 = vld [vmem:[%s1 + $0xb0] sm:$0xf]
  %v69 = vld [vmem:[%s1 + $0xb4] sm:$0xf]
  %v70 = vld [vmem:[%s1 + $0xb8] sm:$0xf]
  %v71 = vld [vmem:[%s1 + $0xbc] sm:$0xf]
  %v72 = vld [vmem:[%s1 + $0xc0] sm:$0xf]
  %v73 = vld [vmem:[%s1 + $0xc4] sm:$0xf]
  %v74 = vld [vmem:[%s1 + $0xc8] sm:$0xf]
  %v75 = vld [vmem:[%s1 + $0xcc] sm:$0xf]
  %v76 = vld [vmem:[%s1 + $0xd0] sm:$0xf]
  %v77 = vld [vmem:[%s1 + $0xd4] sm:$0xf]
  %v78 = vld [vmem:[%s1 + $0xd8] sm:$0xf]
  %v79 = vld [vmem:[%s1 + $0xdc] sm:$0xf]
  %v80 = vld [vmem:[%s1 + $0xe0] sm:$0xf]
  %v81 = vld [vmem:[%s1 + $0xe4] sm:$0xf]
  %v82 = vld [vmem:[%s1 + $0xe8] sm:$0xf]
  %v83 = vld [vmem:[%s1 + $0xec] sm:$0xf]
  %v84 = vld [vmem:[%s1 + $0xf0] sm:$0xf]
  %v85 = vld [vmem:[%s1 + $0xf4] sm:$0xf]
  %v86 = vld [vmem:[%s1 + $0xf8] sm:$0xf]
  %v87 = vld [vmem:[%s1 + $0xfc] sm:$0xf]
  %v88 = vld [vmem:[%s1 + $0x100] sm:$0xf]
  %v89 = vld [vmem:[%s1 + $0x104] sm:$0xf]
  %v90 = vld [vmem:[%s1 + $0x108] sm:$0xf]
  %v91 = vld [vmem:[%s1 + $0x10c] sm:$0xf]
  %v92 = vld [vmem:[%s1 + $0x110] sm:$0xf]
  %v93 = vld [vmem:[%s1 + $0x114] sm:$0xf]
  %v94 = vld [vmem:[%s1 + $0x118] sm:$0xf]
  %v95 = vld [vmem:[%s1 + $0x11c] sm:$0xf]
  %v96 = vld [vmem:[%s1 + $0x120] sm:$0xf]
  %v97 = vld [vmem:[%s1 + $0x124] sm:$0xf]
  %v98 = vld [vmem:[%s1 + $0x128] sm:$0xf]
  %v99 = vld [vmem:[%s1 + $0x12c] sm:$0xf]
  %v100 = vld [vmem:[%s1 + $0x130] sm:$0xf]
  %v101 = vld [vmem:[%s1 + $0x134] sm:$0xf]
  %v102 = vld [vmem:[%s1 + $0x138] sm:$0xf]
  %v103 = vld [vmem:[%s1 + $0x13c] sm:$0xf]
  %v104 = vld [vmem:[%s1 + $0x140] sm:$0xf]
  %v105 = vld [vmem:[%s1 + $0x144] sm:$0xf]
  %v106 = vld [vmem:[%s1 + $0x148] sm:$0xf]
  %v107 = vld [vmem:[%s1 + $0x14c] sm:$0xf]
  %v108 = vld [vmem:[%s1 + $0x150] sm:$0xf]
  %v109 = vld [vmem:[%s1 + $0x154] sm:$0xf]
  %v110 = vld [vmem:[%s1 + $0x158] sm:$0xf]
  %v111 = vld [vmem:[%s1 + $0x15c] sm:$0xf]
  %v112 = vld [vmem:[%s1 + $0x160] sm:$0xf]
  %v113 = vld [vmem:[%s1 + $0x164] sm:$0xf]
  %v114 = vld [vmem:[%s1 + $0x168] sm:$0xf]
  %v115 = vld [vmem:[%s1 + $0x16c] sm:$0xf]
  %v116 = vld [vmem:[%s1 + $0x170] sm:$0xf]
  %v117 = vld [vmem:[%s1 + $0x174] sm:$0xf]
  %v118 = vld [vmem:[%s1 + $0x178] sm:$0xf]
  %v119 = vld [vmem:[%s1 + $0x17c] sm:$0xf]
  %v120 = vld [vmem:[%s1 + $0x180] sm:$0xf]
  %v121 = vld [vmem:[%s1 + $0x184] sm:$0xf]
  %v122 = vld [vmem:[%s1 + $0x188] sm:$0xf]
  %v123 = vld [vmem:[%s1 + $0x18c] sm:$0xf]
  %v124 = vld [vmem:[%s1 + $0x190] sm:$0xf]
  %v125 = vld [vmem:[%s1 + $0x194] sm:$0xf]
  %v126 = vld [vmem:[%s1 + $0x198] sm:$0xf]
  %v127 = vld [vmem:[%s1 + $0x19c] sm:$0xf]
  %v128 = vld [vmem:[%s1 + $0x1a0] sm:$0xf]
  %v129 = vld [vmem:[%s1 + $0x1a4] sm:$0xf]
  %v130 = vld [vmem:[%s1 + $0x1a8] sm:$0xf]
  %v131 = vld [vmem:[%s1 + $0x1ac] sm:$0xf]
  %v132 = vld [vmem:[%s1 + $0x1b0] sm:$0xf]
  %v133 = vld [vmem:[%s1 + $0x1b4] sm:$0xf]
  %v134 = vld [vmem:[%s1 + $0x1b8] sm:$0xf]
  %v135 = vld [vmem:[%s1 + $0x1bc] sm:$0xf]
  %v136 = vld [vmem:[%s1 + $0x1c0] sm:$0xf]
  %v137 = vld [vmem:[%s1 + $0x1c4] sm:$0xf]
  %v138 = vld [vmem:[%s1 + $0x1c8] sm:$0xf]
  %v139 = vld [vmem:[%s1 + $0x1cc] sm:$0xf]
  %v140 = vld [vmem:[%s1 + $0x1d0] sm:$0xf]
  %v141 = vld [vmem:[%s1 + $0x1d4] sm:$0xf]
  %v142 = vld [vmem:[%s1 + $0x1d8] sm:$0xf]
  %v143 = vld [vmem:[%s1 + $0x1dc] sm:$0xf]
  %v144 = vld [vmem:[%s1 + $0x1e0] sm:$0xf]
  %v145 = vld [vmem:[%s1 + $0x1e4] sm:$0xf]
  %v146 = vld [vmem:[%s1 + $0x1e8] sm:$0xf]
  %v147 = vld [vmem:[%s1 + $0x1ec] sm:$0xf]
  %v148 = vld [vmem:[%s1 + $0x1f0] sm:$0xf]
  %v149 = vld [vmem:[%s1 + $0x1f4] sm:$0xf]
  %v150 = vld [vmem:[%s1 + $0x1f8] sm:$0xf]
  %v151 = vld [vmem:[%s1 + $0x1fc] sm:$0xf]
  %v152 = vld [vmem:[%s2] sm:$0x1]
  %v154 = vperm.slane %v152, 0
  %v160 = vunpack.c.l.b16 %v20
  %v161 = vunpack.c.h.b16 %v20
  %v162 = vunpack.c.l.b16 %v21
  %v163 = vunpack.c.h.b16 %v21
  %v164 = vunpack.c.l.b16 %v22
  %v165 = vunpack.c.h.b16 %v22
  %v166 = vunpack.c.l.b16 %v23
  %v167 = vunpack.c.h.b16 %v23
  %v168 = vpack.c.b16 %v160, %v160
  %v169 = vpack.c.b16 %v161, %v161
  %v170 = vpack.c.b16 %v162, %v162
  %v171 = vpack.c.b16 %v163, %v163
  %v172 = vpack.c.b16 %v164, %v164
  %v173 = vpack.c.b16 %v165, %v165
  %v174 = vpack.c.b16 %v166, %v166
  %v175 = vpack.c.b16 %v167, %v167
  %v312 = vunpack.c.l.b16 %v24
  %v313 = vunpack.c.l.b16 %v25
  %v314 = vunpack.c.l.b16 %v26
  %v315 = vunpack.c.l.b16 %v27
  %v316 = vunpack.c.l.b16 %v28
  %v317 = vunpack.c.l.b16 %v29
  %v318 = vunpack.c.l.b16 %v30
  %v319 = vunpack.c.l.b16 %v31
  %v320 = vunpack.c.l.b16 %v32
  %v321 = vunpack.c.l.b16 %v33
  %v322 = vunpack.c.l.b16 %v34
  %v323 = vunpack.c.l.b16 %v35
  %v324 = vunpack.c.l.b16 %v36
  %v325 = vunpack.c.l.b16 %v37
  %v326 = vunpack.c.l.b16 %v38
  %v327 = vunpack.c.l.b16 %v39
  %v328 = vunpack.c.l.b16 %v40
  %v329 = vunpack.c.l.b16 %v41
  %v330 = vunpack.c.l.b16 %v42
  %v331 = vunpack.c.l.b16 %v43
  %v332 = vunpack.c.l.b16 %v44
  %v333 = vunpack.c.l.b16 %v45
  %v334 = vunpack.c.l.b16 %v46
  %v335 = vunpack.c.l.b16 %v47
  %v336 = vunpack.c.l.b16 %v48
  %v337 = vunpack.c.l.b16 %v49
  %v338 = vunpack.c.l.b16 %v50
  %v339 = vunpack.c.l.b16 %v51
  %v340 = vunpack.c.l.b16 %v52
  %v341 = vunpack.c.l.b16 %v53
  %v342 = vunpack.c.l.b16 %v54
  %v343 = vunpack.c.l.b16 %v55
  %v344 = vunpack.c.l.b16 %v56
  %v345 = vunpack.c.l.b16 %v57
  %v346 = vunpack.c.l.b16 %v58
  %v347 = vunpack.c.l.b16 %v59
  %v348 = vunpack.c.l.b16 %v60
  %v349 = vunpack.c.l.b16 %v61
  %v350 = vunpack.c.l.b16 %v62
  %v351 = vunpack.c.l.b16 %v63
  %v352 = vunpack.c.l.b16 %v64
  %v353 = vunpack.c.l.b16 %v65
  %v354 = vunpack.c.l.b16 %v66
  %v355 = vunpack.c.l.b16 %v67
  %v356 = vunpack.c.l.b16 %v68
  %v357 = vunpack.c.l.b16 %v69
  %v358 = vunpack.c.l.b16 %v70
  %v359 = vunpack.c.l.b16 %v71
  %v360 = vunpack.c.l.b16 %v72
  %v361 = vunpack.c.l.b16 %v73
  %v362 = vunpack.c.l.b16 %v74
  %v363 = vunpack.c.l.b16 %v75
  %v364 = vunpack.c.l.b16 %v76
  %v365 = vunpack.c.l.b16 %v77
  %v366 = vunpack.c.l.b16 %v78
  %v367 = vunpack.c.l.b16 %v79
  %v368 = vunpack.c.l.b16 %v80
  %v369 = vunpack.c.l.b16 %v81
  %v370 = vunpack.c.l.b16 %v82
  %v371 = vunpack.c.l.b16 %v83
  %v372 = vunpack.c.l.b16 %v84
  %v373 = vunpack.c.l.b16 %v85
  %v374 = vunpack.c.l.b16 %v86
  %v375 = vunpack.c.l.b16 %v87
  %v376 = vunpack.c.l.b16 %v88
  %v377 = vunpack.c.l.b16 %v89
  %v378 = vunpack.c.l.b16 %v90
  %v379 = vunpack.c.l.b16 %v91
  %v380 = vunpack.c.l.b16 %v92
  %v381 = vunpack.c.l.b16 %v93
  %v382 = vunpack.c.l.b16 %v94
  %v383 = vunpack.c.l.b16 %v95
  %v384 = vunpack.c.l.b16 %v96
  %v385 = vunpack.c.l.b16 %v97
  %v386 = vunpack.c.l.b16 %v98
  %v387 = vunpack.c.l.b16 %v99
  %v388 = vunpack.c.l.b16 %v100
  %v389 = vunpack.c.l.b16 %v101
  %v390 = vunpack.c.l.b16 %v102
  %v391 = vunpack.c.l.b16 %v103
  %v392 = vunpack.c.l.b16 %v104
  %v393 = vunpack.c.l.b16 %v105
  %v394 = vunpack.c.l.b16 %v106
  %v395 = vunpack.c.l.b16 %v107
  %v396 = vunpack.c.l.b16 %v108
  %v397 = vunpack.c.l.b16 %v109
  %v398 = vunpack.c.l.b16 %v110
  %v399 = vunpack.c.l.b16 %v111
  %v400 = vunpack.c.l.b16 %v112
  %v401 = vunpack.c.l.b16 %v113
  %v402 = vunpack.c.l.b16 %v114
  %v403 = vunpack.c.l.b16 %v115
  %v404 = vunpack.c.l.b16 %v116
  %v405 = vunpack.c.l.b16 %v117
  %v406 = vunpack.c.l.b16 %v118
  %v407 = vunpack.c.l.b16 %v119
  %v408 = vunpack.c.l.b16 %v120
  %v409 = vunpack.c.l.b16 %v121
  %v410 = vunpack.c.l.b16 %v122
  %v411 = vunpack.c.l.b16 %v123
  %v412 = vunpack.c.l.b16 %v124
  %v413 = vunpack.c.l.b16 %v125
  %v414 = vunpack.c.l.b16 %v126
  %v415 = vunpack.c.l.b16 %v127
  %v416 = vunpack.c.l.b16 %v128
  %v417 = vunpack.c.l.b16 %v129
  %v418 = vunpack.c.l.b16 %v130
  %v419 = vunpack.c.l.b16 %v131
  %v420 = vunpack.c.l.b16 %v132
  %v421 = vunpack.c.l.b16 %v133
  %v422 = vunpack.c.l.b16 %v134
  %v423 = vunpack.c.l.b16 %v135
  %v424 = vunpack.c.l.b16 %v136
  %v425 = vunpack.c.l.b16 %v137
  %v426 = vunpack.c.l.b16 %v138
  %v427 = vunpack.c.l.b16 %v139
  %v428 = vunpack.c.l.b16 %v140
  %v429 = vunpack.c.l.b16 %v141
  %v430 = vunpack.c.l.b16 %v142
  %v431 = vunpack.c.l.b16 %v143
  %v432 = vunpack.c.l.b16 %v144
  %v433 = vunpack.c.l.b16 %v145
  %v434 = vunpack.c.l.b16 %v146
  %v435 = vunpack.c.l.b16 %v147
  %v436 = vunpack.c.l.b16 %v148
  %v437 = vunpack.c.l.b16 %v149
  %v438 = vunpack.c.l.b16 %v150
  %v439 = vunpack.c.l.b16 %v151
  %v440 = vpack.c.b16 %v313, %v312
  %v441 = vpack.c.b16 %v315, %v314
  %v442 = vpack.c.b16 %v317, %v316
  %v443 = vpack.c.b16 %v319, %v318
  %v444 = vpack.c.b16 %v321, %v320
  %v445 = vpack.c.b16 %v323, %v322
  %v446 = vpack.c.b16 %v325, %v324
  %v447 = vpack.c.b16 %v327, %v326
  %v448 = vpack.c.b16 %v329, %v328
  %v449 = vpack.c.b16 %v331, %v330
  %v450 = vpack.c.b16 %v333, %v332
  %v451 = vpack.c.b16 %v335, %v334
  %v452 = vpack.c.b16 %v337, %v336
  %v453 = vpack.c.b16 %v339, %v338
  %v454 = vpack.c.b16 %v341, %v340
  %v455 = vpack.c.b16 %v343, %v342
  %v456 = vpack.c.b16 %v345, %v344
  %v457 = vpack.c.b16 %v347, %v346
  %v458 = vpack.c.b16 %v349, %v348
  %v459 = vpack.c.b16 %v351, %v350
  %v460 = vpack.c.b16 %v353, %v352
  %v461 = vpack.c.b16 %v355, %v354
  %v462 = vpack.c.b16 %v357, %v356
  %v463 = vpack.c.b16 %v359, %v358
  %v464 = vpack.c.b16 %v361, %v360
  %v465 = vpack.c.b16 %v363, %v362
  %v466 = vpack.c.b16 %v365, %v364
  %v467 = vpack.c.b16 %v367, %v366
  %v468 = vpack.c.b16 %v369, %v368
  %v469 = vpack.c.b16 %v371, %v370
  %v470 = vpack.c.b16 %v373, %v372
  %v471 = vpack.c.b16 %v375, %v374
  %v472 = vpack.c.b16 %v377, %v376
  %v473 = vpack.c.b16 %v379, %v378
  %v474 = vpack.c.b16 %v381, %v380
  %v475 = vpack.c.b16 %v383, %v382
  %v476 = vpack.c.b16 %v385, %v384
  %v477 = vpack.c.b16 %v387, %v386
  %v478 = vpack.c.b16 %v389, %v388
  %v479 = vpack.c.b16 %v391, %v390
  %v480 = vpack.c.b16 %v393, %v392
  %v481 = vpack.c.b16 %v395, %v394
  %v482 = vpack.c.b16 %v397, %v396
  %v483 = vpack.c.b16 %v399, %v398
  %v484 = vpack.c.b16 %v401, %v400
  %v485 = vpack.c.b16 %v403, %v402
  %v486 = vpack.c.b16 %v405, %v404
  %v487 = vpack.c.b16 %v407, %v406
  %v488 = vpack.c.b16 %v409, %v408
  %v489 = vpack.c.b16 %v411, %v410
  %v490 = vpack.c.b16 %v413, %v412
  %v491 = vpack.c.b16 %v415, %v414
  %v492 = vpack.c.b16 %v417, %v416
  %v493 = vpack.c.b16 %v419, %v418
  %v494 = vpack.c.b16 %v421, %v420
  %v495 = vpack.c.b16 %v423, %v422
  %v496 = vpack.c.b16 %v425, %v424
  %v497 = vpack.c.b16 %v427, %v426
  %v498 = vpack.c.b16 %v429, %v428
  %v499 = vpack.c.b16 %v431, %v430
  %v500 = vpack.c.b16 %v433, %v432
  %v501 = vpack.c.b16 %v435, %v434
  %v502 = vpack.c.b16 %v437, %v436
  %v503 = vpack.c.b16 %v439, %v438
  %568 = vmatpush.bf16.msra.mxu0 %v447
  %569 = vmatpush.bf16.msra.mxu0 %v446
  %570 = vmatpush.bf16.msra.mxu0 %v445
  %571 = vmatpush.bf16.msra.mxu0 %v444
  %572 = vmatpush.bf16.msra.mxu0 %v443
  %573 = vmatpush.bf16.msra.mxu0 %v442
  %574 = vmatpush.bf16.msra.mxu0 %v441
  %575 = vmatpush.bf16.msra.mxu0 %v440
  %576 = vmatmul.bf16.gmra.mxu0 %v168
  %v577 = vpop.f32.mrf.mxu0
  %v578 = vadd.f32 %v154, %v577
  %v579 = vpop.f32.mrf.mxu0
  %580 = vdwg.mxu0
  %581 = vmatpush.bf16.msra.mxu0 %v455
  %582 = vmatpush.bf16.msra.mxu0 %v454
  %583 = vmatpush.bf16.msra.mxu0 %v453
  %584 = vmatpush.bf16.msra.mxu0 %v452
  %585 = vmatpush.bf16.msra.mxu0 %v451
  %586 = vmatpush.bf16.msra.mxu0 %v450
  %587 = vmatpush.bf16.msra.mxu0 %v449
  %588 = vmatpush.bf16.msra.mxu0 %v448
  %589 = vmatmul.bf16.gmra.mxu0 %v169
  %v590 = vpop.f32.mrf.mxu0
  %v591 = vadd.f32 %v578, %v590
  %v592 = vpop.f32.mrf.mxu0
  %593 = vdwg.mxu0
  %594 = vmatpush.bf16.msra.mxu0 %v463
  %595 = vmatpush.bf16.msra.mxu0 %v462
  %596 = vmatpush.bf16.msra.mxu0 %v461
  %597 = vmatpush.bf16.msra.mxu0 %v460
  %598 = vmatpush.bf16.msra.mxu0 %v459
  %599 = vmatpush.bf16.msra.mxu0 %v458
  %600 = vmatpush.bf16.msra.mxu0 %v457
  %601 = vmatpush.bf16.msra.mxu0 %v456
  %602 = vmatmul.bf16.gmra.mxu0 %v170
  %v603 = vpop.f32.mrf.mxu0
  %v604 = vadd.f32 %v591, %v603
  %v605 = vpop.f32.mrf.mxu0
  %606 = vdwg.mxu0
  %607 = vmatpush.bf16.msra.mxu0 %v471
  %608 = vmatpush.bf16.msra.mxu0 %v470
  %609 = vmatpush.bf16.msra.mxu0 %v469
  %610 = vmatpush.bf16.msra.mxu0 %v468
  %611 = vmatpush.bf16.msra.mxu0 %v467
  %612 = vmatpush.bf16.msra.mxu0 %v466
  %613 = vmatpush.bf16.msra.mxu0 %v465
  %614 = vmatpush.bf16.msra.mxu0 %v464
  %615 = vmatmul.bf16.gmra.mxu0 %v171
  %v616 = vpop.f32.mrf.mxu0
  %v617 = vadd.f32 %v604, %v616
  %v618 = vpop.f32.mrf.mxu0
  %619 = vdwg.mxu0
  %620 = vmatpush.bf16.msra.mxu0 %v479
  %621 = vmatpush.bf16.msra.mxu0 %v478
  %622 = vmatpush.bf16.msra.mxu0 %v477
  %623 = vmatpush.bf16.msra.mxu0 %v476
  %624 = vmatpush.bf16.msra.mxu0 %v475
  %625 = vmatpush.bf16.msra.mxu0 %v474
  %626 = vmatpush.bf16.msra.mxu0 %v473
  %627 = vmatpush.bf16.msra.mxu0 %v472
  %628 = vmatmul.bf16.gmra.mxu0 %v172
  %v629 = vpop.f32.mrf.mxu0
  %v630 = vadd.f32 %v617, %v629
  %v631 = vpop.f32.mrf.mxu0
  %632 = vdwg.mxu0
  %633 = vmatpush.bf16.msra.mxu0 %v487
  %634 = vmatpush.bf16.msra.mxu0 %v486
  %635 = vmatpush.bf16.msra.mxu0 %v485
  %636 = vmatpush.bf16.msra.mxu0 %v484
  %637 = vmatpush.bf16.msra.mxu0 %v483
  %638 = vmatpush.bf16.msra.mxu0 %v482
  %639 = vmatpush.bf16.msra.mxu0 %v481
  %640 = vmatpush.bf16.msra.mxu0 %v480
  %641 = vmatmul.bf16.gmra.mxu0 %v173
  %v642 = vpop.f32.mrf.mxu0
  %v643 = vadd.f32 %v630, %v642
  %v644 = vpop.f32.mrf.mxu0
  %645 = vdwg.mxu0
  %646 = vmatpush.bf16.msra.mxu0 %v495
  %647 = vmatpush.bf16.msra.mxu0 %v494
  %648 = vmatpush.bf16.msra.mxu0 %v493
  %649 = vmatpush.bf16.msra.mxu0 %v492
  %650 = vmatpush.bf16.msra.mxu0 %v491
  %651 = vmatpush.bf16.msra.mxu0 %v490
  %652 = vmatpush.bf16.msra.mxu0 %v489
  %653 = vmatpush.bf16.msra.mxu0 %v488
  %654 = vmatmul.bf16.gmra.mxu0 %v174
  %v655 = vpop.f32.mrf.mxu0
  %v656 = vadd.f32 %v643, %v655
  %v657 = vpop.f32.mrf.mxu0
  %658 = vdwg.mxu0
  %659 = vmatpush.bf16.msra.mxu0 %v503
  %660 = vmatpush.bf16.msra.mxu0 %v502
  %661 = vmatpush.bf16.msra.mxu0 %v501
  %662 = vmatpush.bf16.msra.mxu0 %v500
  %663 = vmatpush.bf16.msra.mxu0 %v499
  %664 = vmatpush.bf16.msra.mxu0 %v498
  %665 = vmatpush.bf16.msra.mxu0 %v497
  %666 = vmatpush.bf16.msra.mxu0 %v496
  %667 = vmatmul.bf16.gmra.mxu0 %v175
  %v668 = vpop.f32.mrf.mxu0
  %v669 = vadd.f32 %v656, %v668
  %v670 = vpop.f32.mrf.mxu0
  %671 = vdwg.mxu0
  %v672 = vmax.f32 %v669, 0.0
  %v673 = vpack.c.bf16 %v672, %v672
  %v674 = vld [vmem:[%s3] sm:$0xf]
  %v675 = vld [vmem:[%s3 + $0x4] sm:$0xf]
  %v676 = vld [vmem:[%s3 + $0x8] sm:$0xf]
  %v677 = vld [vmem:[%s3 + $0xc] sm:$0xf]
  %v678 = vld [vmem:[%s3 + $0x10] sm:$0xf]
  %v679 = vld [vmem:[%s3 + $0x14] sm:$0xf]
  %v680 = vld [vmem:[%s3 + $0x18] sm:$0xf]
  %v681 = vld [vmem:[%s3 + $0x1c] sm:$0xf]
  %v682 = vld [vmem:[%s3 + $0x20] sm:$0xf]
  %v683 = vld [vmem:[%s3 + $0x24] sm:$0xf]
  %v684 = vld [vmem:[%s3 + $0x28] sm:$0xf]
  %v685 = vld [vmem:[%s3 + $0x2c] sm:$0xf]
  %v686 = vld [vmem:[%s3 + $0x30] sm:$0xf]
  %v687 = vld [vmem:[%s3 + $0x34] sm:$0xf]
  %v688 = vld [vmem:[%s3 + $0x38] sm:$0xf]
  %v689 = vld [vmem:[%s3 + $0x3c] sm:$0xf]
  %v690 = vld [vmem:[%s4] sm:$0x1]
  %v692 = vperm.slane %v690, 0
  %v710 = vunpack.c.l.b16 %v674
  %v711 = vunpack.c.l.b16 %v675
  %v712 = vunpack.c.l.b16 %v676
  %v713 = vunpack.c.l.b16 %v677
  %v714 = vunpack.c.l.b16 %v678
  %v715 = vunpack.c.l.b16 %v679
  %v716 = vunpack.c.l.b16 %v680
  %v717 = vunpack.c.l.b16 %v681
  %v718 = vunpack.c.l.b16 %v682
  %v719 = vunpack.c.l.b16 %v683
  %v720 = vunpack.c.l.b16 %v684
  %v721 = vunpack.c.l.b16 %v685
  %v722 = vunpack.c.l.b16 %v686
  %v723 = vunpack.c.l.b16 %v687
  %v724 = vunpack.c.l.b16 %v688
  %v725 = vunpack.c.l.b16 %v689
  %v726 = vpack.c.b16 %v711, %v710
  %v727 = vpack.c.b16 %v713, %v712
  %v728 = vpack.c.b16 %v715, %v714
  %v729 = vpack.c.b16 %v717, %v716
  %v730 = vpack.c.b16 %v719, %v718
  %v731 = vpack.c.b16 %v721, %v720
  %v732 = vpack.c.b16 %v723, %v722
  %v733 = vpack.c.b16 %v725, %v724
  %742 = vmatpush.bf16.msra.mxu0 %v733
  %743 = vmatpush.bf16.msra.mxu0 %v732
  %744 = vmatpush.bf16.msra.mxu0 %v731
  %745 = vmatpush.bf16.msra.mxu0 %v730
  %746 = vmatpush.bf16.msra.mxu0 %v729
  %747 = vmatpush.bf16.msra.mxu0 %v728
  %748 = vmatpush.bf16.msra.mxu0 %v727
  %749 = vmatpush.bf16.msra.mxu0 %v726
  %750 = vmatmul.bf16.gmra.mxu0 %v673
  %v751 = vpop.f32.mrf.mxu0
  %v752 = vadd.f32 %v692, %v751
  %v753 = vpop.f32.mrf.mxu0
  %754 = vdwg.mxu0
  %755 = vmax.xlane.f32.xlu0 %v752
  %v756 = vpop.xlane.xlu0 %755
  %v757 = vsub.f32 %v752, %v756
  %v758 = vmul.f32 %v757, 1.442695
  %v759 = vpow.pop %v758
  %760 = vadd.xlane.f32.xlu0 %v759
  %v761 = vpop.xlane.xlu0 %760
  %v762 = vrcp.pop %v761
  %v763 = vmul.f32 %v759, %v762
  %764 = vst [vmem:[%s5] sm:$0xff] %v763
  // Predicated region
  $region22: #{neural_network_forward.1} parent=0 // pred_check
    _
  $region23: #{neural_network_forward.1} parent=0 // pred_check_branch
    %766 = sbr.rel (0) target = $region25
  $region24: #{neural_network_forward.1} parent=0 // pred_region
    _
  $region25: #{neural_network_forward.1} parent=0 // pred_fallthru
    _
  // Predicated region
  $region26: #{neural_network_forward.1} parent=0 // pred_check
    _
  $region27: #{neural_network_forward.1} parent=0 // pred_check_branch
    %768 = sbr.rel (0) target = $region29
  $region28: #{neural_network_forward.1} parent=0 // pred_region
    _
  $region29: #{neural_network_forward.1} parent=0 // pred_fallthru
    _

</llo_original>
